<compile_context>
chip_gen: v5e
topology: v5e:2x2
jax: 0.10.0
libtpu: 0.0.40
codegen_flags: <defaults>
</compile_context>

<pallas_src>
import jax
import jax.numpy as jnp
from jax import lax
from jax.experimental import pallas as pl
from jax.experimental.pallas import tpu as pltpu

_EPS = 1e-12  # F.normalize default eps


def _round_up(x, m):
    return ((x + m - 1) // m) * m


def _tpu_defaults():
    """Return (n_split, input_vmem_budget, vmem_limit_bytes) per generation."""
    kind = ""
    try:
        kind = jax.devices()[0].device_kind.lower()
    except Exception:
        pass
    vmem_cap = None
    try:
        vmem_cap = int(pltpu.get_tpu_info().vmem_capacity_bytes)
    except Exception:
        pass
    if vmem_cap is None:
        # Known 128 MiB generations; anything unknown gets the conservative
        # 64 MiB (v7x-safe) sizing.
        if any(g in kind for g in ("v4", "v5", "v6")):
            vmem_cap = 128 * 1024 * 1024
        else:
            vmem_cap = 64 * 1024 * 1024
    # 2 TensorCores per chip only on v7x -> split the D reduction across them.
    n_split = 2 if "v7" in kind else 1
    input_budget = (vmem_cap * 5) // 8     # 40 MiB on v7x, 80 MiB on v5e/v6e
    vmem_limit = (vmem_cap * 27) // 32     # 54 MiB on v7x, 108 MiB on v5e/v6e
    return n_split, input_budget, vmem_limit


def _gram(x2d, *, n_split, input_vmem_budget, vmem_limit_bytes):
    """(B, D) -> (B, B) float32 Gram matrix X @ X.T via a Pallas kernel."""
    B, D = x2d.shape
    itemsize = jnp.dtype(x2d.dtype).itemsize
    # Sublane granule: 8 rows for 4-byte, 16 for 2-byte, 32 for 1-byte dtypes.
    granule = max(8, 32 // itemsize)
    rows_eff = max(_round_up(B, granule), granule)

    n128_total = pl.cdiv(D, 128)
    n_split = max(1, min(n_split, n128_total))
    # One input, double-buffered: 2 * rows_eff * tk * itemsize <= budget.
    cap128 = max(1, input_vmem_budget // (2 * rows_eff * itemsize * 128))

    def _tiling(ns):
        per = pl.cdiv(n128_total, ns)       # 128-lane groups per split
        g = min(cap128, per)
        return 128 * g, pl.cdiv(per, g)     # (tk, n_k)

    tk, n_k = _tiling(n_split)
    # Never let an entire split start past the last column (no fully-OOB DMA).
    while n_split > 1 and (n_split - 1) * n_k * tk >= D:
        n_split -= 1
        tk, n_k = _tiling(n_split)

    need_mask = (n_split * n_k * tk) != D   # static: only mask ragged tails

    def kernel(x_ref, g_ref):
        @pl.when(pl.program_id(1) == 0)
        def _():
            g_ref[...] = jnp.zeros_like(g_ref)

        x = x_ref[...]
        if need_mask:
            col0 = (pl.program_id(0) * n_k + pl.program_id(1)) * tk
            lane = lax.broadcasted_iota(jnp.int32, x.shape, 1)
            x = jnp.where(lane + col0 < D, x, jnp.zeros_like(x))
        # Contract the last dim of both operands: X @ X.T with no transposed
        # copy of the block; accumulate in f32 on the MXU.
        g_ref[...] += lax.dot_general(
            x, x, (((1,), (1,)), ((), ())),
            preferred_element_type=jnp.float32)

    parts = pl.pallas_call(
        kernel,
        out_shape=jax.ShapeDtypeStruct((n_split, B, B), jnp.float32),
        grid_spec=pltpu.PrefetchScalarGridSpec(
            num_scalar_prefetch=0,
            grid=(n_split, n_k),
            in_specs=[pl.BlockSpec((B, tk), lambda c, k: (0, c * n_k + k))],
            out_specs=pl.BlockSpec((None, B, B), lambda c, k: (c, 0, 0)),
        ),
        compiler_params=pltpu.CompilerParams(
            # TODO(synk): profile on v7x and confirm "parallel" actually
            # shards the leading axis across both TensorCores; if not, switch
            # that axis to pltpu.CORE_PARALLEL.
            dimension_semantics=("parallel", "arbitrary"),
            vmem_limit_bytes=int(vmem_limit_bytes)),
    )(x2d)

    return jnp.sum(parts, axis=0)


def sp_loss(fm_s, fm_t, *, n_split=None, input_vmem_budget=None,
            vmem_limit_bytes=None):
    """Similarity-preserving KD loss (scalar), matching the PyTorch SP module."""
    B = fm_s.shape[0]
    assert fm_t.shape[0] == B, "batch sizes must match"

    d_split, d_budget, d_limit = _tpu_defaults()
    n_split = d_split if n_split is None else n_split
    input_vmem_budget = d_budget if input_vmem_budget is None else input_vmem_budget
    vmem_limit_bytes = d_limit if vmem_limit_bytes is None else vmem_limit_bytes

    kw = dict(n_split=n_split, input_vmem_budget=input_vmem_budget,
              vmem_limit_bytes=vmem_limit_bytes)
    gs = _gram(fm_s.reshape(B, -1), **kw)
    gt = _gram(fm_t.reshape(B, -1), **kw)

    def _row_normalize(g):
        sumsq = jnp.sum(g * g, axis=1, keepdims=True)
        # 1 / max(||row||, eps) == rsqrt(max(sumsq, eps^2))
        return g * lax.rsqrt(jnp.maximum(sumsq, _EPS * _EPS))

    diff = _row_normalize(gs) - _row_normalize(gt)
    return jnp.sum(diff * diff) / float(B * B)


def _sp_loss_ref(fm_s, fm_t):
    """Pure-JAX reference mirroring the PyTorch module."""
    B = fm_s.shape[0]
    s = fm_s.reshape(B, -1).astype(jnp.float32)
    t = fm_t.reshape(B, -1).astype(jnp.float32)
    gs = s @ s.T
    gt = t @ t.T
    ns = gs / jnp.maximum(jnp.linalg.norm(gs, axis=1, keepdims=True), _EPS)
    nt = gt / jnp.maximum(jnp.linalg.norm(gt, axis=1, keepdims=True), _EPS)
    return jnp.mean((ns - nt) ** 2)


if __name__ == "__main__":
    key = jax.random.PRNGKey(0)
    k1, k2, k3, k4 = jax.random.split(key, 4)

    # Case 1: aligned D (B=2, C=4, 16x16 -> D=1024, multiple of 128).
    fm_s = jax.random.normal(k1, (2, 4, 16, 16), dtype=jnp.float32)
    fm_t = jax.random.normal(k2, (2, 4, 16, 16), dtype=jnp.float32)
    loss = jax.block_until_ready(sp_loss(fm_s, fm_t))
    ref = jax.block_until_ready(_sp_loss_ref(fm_s, fm_t))
    assert jnp.allclose(loss, ref, rtol=5e-5, atol=1e-6), (loss, ref)

    # Case 2: ragged D (5*7*9 = 315) + B=3 + mismatched student/teacher
    # feature sizes -> exercises the in-kernel tail masking (no jnp.pad path).
    fm_s2 = jax.random.normal(k3, (3, 5, 7, 9), dtype=jnp.float32)
    fm_t2 = jax.random.normal(k4, (3, 10, 7, 9), dtype=jnp.float32)
    loss2 = jax.block_until_ready(sp_loss(fm_s2, fm_t2))
    ref2 = jax.block_until_ready(_sp_loss_ref(fm_s2, fm_t2))
    assert jnp.allclose(loss2, ref2, rtol=5e-5, atol=1e-6), (loss2, ref2)

    print("KERNEL_OK")
</pallas_src>

<mosaic_0001>
module attributes {stable_mosaic.version = 11 : i64} {
  func.func @kernel(%arg0: i32, %arg1: i32, %arg2: memref<2x1024xf32, #tpu.memory_space<vmem>>, %arg3: memref<1x2x2xf32, #tpu.memory_space<vmem>>) attributes {dimension_semantics = [#tpu.dimension_semantics<parallel>, #tpu.dimension_semantics<arbitrary>], iteration_bounds = array<i64: 1, 1>, scalar_prefetch = 0 : i64, scratch_operands = 0 : i64, tpu.core_type = #tpu.core_type<tc>, window_params = [{transform_indices = @transform_0, window_bounds = array<i64: 2, 1024>}, {transform_indices = @transform_1, window_bounds = array<i64: 1, 2, 2>}]} {
    %c0_i32 = arith.constant 0 : i32
    %0 = arith.cmpi eq, %arg1, %c0_i32 : i32
    %1 = arith.extui %0 : i1 to i32
    %c0_i32_0 = arith.constant 0 : i32
    %2 = arith.cmpi ne, %1, %c0_i32_0 : i32
    scf.if %2 {
      %cst_8 = arith.constant 0.000000e+00 : f32
      %11 = vector.broadcast %cst_8 : f32 to vector<2x2xf32>
      %c0_9 = arith.constant 0 : index
      %c0_10 = arith.constant 0 : index
      %c0_11 = arith.constant 0 : index
      %12 = vector.load %arg3[%c0_9, %c0_10, %c0_11] : memref<1x2x2xf32, #tpu.memory_space<vmem>>, vector<1x2x2xf32>
      %13 = vector.shape_cast %12 : vector<1x2x2xf32> to vector<2x2xf32>
      %14 = vector.shape_cast %11 : vector<2x2xf32> to vector<1x2x2xf32>
      tpu.vector_store %arg3[%c0_9, %c0_10, %c0_11], %14 {strides = array<i32>} : memref<1x2x2xf32, #tpu.memory_space<vmem>>, vector<1x2x2xf32>,
    } else {
    }
    %c0 = arith.constant 0 : index
    %c0_1 = arith.constant 0 : index
    %3 = vector.load %arg2[%c0, %c0_1] : memref<2x1024xf32, #tpu.memory_space<vmem>>, vector<2x1024xf32>
    %c0_2 = arith.constant 0 : index
    %c0_3 = arith.constant 0 : index
    %c0_4 = arith.constant 0 : index
    %4 = vector.load %arg3[%c0_2, %c0_3, %c0_4] : memref<1x2x2xf32, #tpu.memory_space<vmem>>, vector<1x2x2xf32>
    %5 = vector.shape_cast %4 : vector<1x2x2xf32> to vector<2x2xf32>
    %cst = arith.constant dense<0.000000e+00> : vector<2x2xf32>
    %6 = tpu.matmul %3, %3, %cst {dimension_numbers = #tpu.dot_dimension_numbers<[1], [1], [0], [0], [0, 0, 1, 0], [], []>} : vector<2x1024xf32>, vector<2x1024xf32>, vector<2x2xf32> -> vector<2x2xf32>
    %7 = arith.addf %5, %6 : vector<2x2xf32>
    %c0_5 = arith.constant 0 : index
    %c0_6 = arith.constant 0 : index
    %c0_7 = arith.constant 0 : index
    %8 = vector.load %arg3[%c0_5, %c0_6, %c0_7] : memref<1x2x2xf32, #tpu.memory_space<vmem>>, vector<1x2x2xf32>
    %9 = vector.shape_cast %8 : vector<1x2x2xf32> to vector<2x2xf32>
    %10 = vector.shape_cast %7 : vector<2x2xf32> to vector<1x2x2xf32>
    tpu.vector_store %arg3[%c0_5, %c0_6, %c0_7], %10 {strides = array<i32>} : memref<1x2x2xf32, #tpu.memory_space<vmem>>, vector<1x2x2xf32>,
    return
  }
  func.func @transform_0(%arg0: i32, %arg1: i32) -> (i32, i32) {
    %c1_i32 = arith.constant 1 : i32
    %0 = arith.muli %arg0, %c1_i32 : i32
    %1 = arith.addi %0, %arg1 : i32
    %c0_i32 = arith.constant 0 : i32
    %c0_i32_0 = arith.constant 0 : i32
    return %c0_i32, %1 : i32, i32
  }
  func.func @transform_1(%arg0: i32, %arg1: i32) -> (i32, i32, i32) {
    %c0_i32 = arith.constant 0 : i32
    %c0_i32_0 = arith.constant 0 : i32
    %c0_i32_1 = arith.constant 0 : i32
    return %arg0, %c0_i32, %c0_i32_0 : i32, i32, i32
  }
}

</mosaic_0001>

<llo_original>
// kernel: tpu_custom_call.1
$region0: #{tpu_custom_call.1}
  #allocation0 [shape = 'u32[]', space=smem, size = 0x4, offset = 0x4, fixed_abs, tag = 'smem constant byte address 0x4 - core index']
  #allocation1 [shape = 'u32[72,128]{1,0:T(1,128)}', space=vmem, size = 0x9000, scoped, tag = 'internal scratch']
  %s0 = inlined_call_operand.hbm [shape: f32[2,1024], index: 0, kind: input, shape index: {}]
  %s1 = inlined_call_operand.hbm [shape: f32[1,2,2], index: 1, kind: output, shape index: {}]
  %s2 = sld [smem:[#allocation0]]
  $region22: #{tpu_custom_call.1} parent=0
    _
  %s4 = ssub.s32 1, %s2
  %s5 = scalar_select 0, %s4, %s2
  $region1: #{tpu_custom_call.1} parent=0
    #allocation2 [shape = 'u8[8192]{0}', space=vmem, size = 0x2000, scoped, tag = 'input window, operand 0, single buffered']
    #allocation3 [shape = 's32[1]{0}', space=sflag, size = 0x4, scoped, tag = 'scoped memory for tpu_custom_call.1']
    #allocation4 [shape = 's32[1]{0}', space=sflag, size = 0x4, scoped, tag = 'scoped memory for tpu_custom_call.1']
    #allocation5 [shape = 'u8[1024]{0}', space=vmem, size = 0x400, scoped, tag = 'output window, operand 0, single buffered']
    %6 = vsyncpa [#allocation3], 0
    %7 = vsyncpa [#allocation4], 0
    // Predicated region
    $region2: #{tpu_custom_call.1} parent=1 // pred_check
      _
    $region3: #{tpu_custom_call.1} parent=1 // pred_check_branch
      %9 = sbr.rel (0) target = $region5
    $region4: #{tpu_custom_call.1} parent=1 // pred_region
      %s10 = sadd.s32 0, 0
      %s11 = smul.u32 8, %s10
      %13 = vsyncadd [#allocation3], 0
      %s14 = smul.addr %s11, 2
      %s15 = scalar_lea.hbm %s0, %s14
      %s17 = sshll.u32 %s15, 4
      %s18 = int_to_ptr.hbm [resolvable:$true] %s17
      %s19 = sshll.u32 [#allocation2], 4
      %s20 = int_to_ptr.vmem [resolvable:$true] %s19
      %22 = dma.hbm_to_vmem [thread:$0]  %s18, 256, %s20, [#allocation3]
    $region5: #{tpu_custom_call.1} parent=1 // pred_fallthru
      _
    // Predicated region
    $region6: #{tpu_custom_call.1} parent=1 // pred_check
      _
    $region7: #{tpu_custom_call.1} parent=1 // pred_check_branch
      %24 = sbr.rel (0) target = $region9
    $region8: #{tpu_custom_call.1} parent=1 // pred_region
      %26 = dma.done [#allocation3], 256
    $region9: #{tpu_custom_call.1} parent=1 // pred_fallthru
      _
    %s27 = sadd.s32 0, 0
    %s28 = smul.u32 8, %s27
    %p29 = scmp.eq.s32.totalorder 0, 0
    // Predicated region
    $region10: #{tpu_custom_call.1} parent=1 // pred_check
      %p30 = pneg %p29
    $region11: #{tpu_custom_call.1} parent=1 // pred_check_branch
      %32 = sbr.rel (%p30) target = $region13
    $region12: #{tpu_custom_call.1} parent=1 // pred_region
      %vm33 = vcmask 9216
      %34 = vst.msk [vmem:[#allocation5] sm:$0x3] %vm33, 0.0
    $region13: #{tpu_custom_call.1} parent=1 // pred_fallthru
      _
    %v35 = vld [vmem:[#allocation2] sm:$0xff]
    %v36 = vld [vmem:[#allocation2 + $0x8] sm:$0xff]
    %v37 = vld [vmem:[#allocation5] sm:$0x3]
    %40 = vst [vmem:[#allocation1] ss:$4 sm:$0xff] %v35
    %s41 = scalar_lea.vmem [#allocation1], 32
    %42 = vst [vmem:[%s41] ss:$4 sm:$0xff] %v36
    %v43 = vld.sshfl [vmem:[#allocation1] sm:$0xff pattern:$0x73625140]
    %v44 = vld.sshfl [vmem:[#allocation1 + $0x8] sm:$0xff pattern:$0x73625140]
    %v45 = vld.sshfl [vmem:[#allocation1 + $0x10] sm:$0xff pattern:$0x73625140]
    %v46 = vld.sshfl [vmem:[#allocation1 + $0x18] sm:$0xff pattern:$0x73625140]
    %v47 = vld.sshfl [vmem:[#allocation1 + $0x20] sm:$0xff pattern:$0x73625140]
    %v48 = vld.sshfl [vmem:[#allocation1 + $0x28] sm:$0xff pattern:$0x73625140]
    %v49 = vld.sshfl [vmem:[#allocation1 + $0x30] sm:$0xff pattern:$0x73625140]
    %v50 = vld.sshfl [vmem:[#allocation1 + $0x38] sm:$0xff pattern:$0x73625140]
    %59 = vst [vmem:[#allocation1] ss:$4 sm:$0xff] %v35
    %s60 = scalar_lea.vmem [#allocation1], 32
    %61 = vst [vmem:[%s60] ss:$4 sm:$0xff] %v36
    %v62 = vld.sshfl [vmem:[#allocation1] sm:$0xff pattern:$0x73625140]
    %v63 = vld.sshfl [vmem:[#allocation1 + $0x8] sm:$0xff pattern:$0x73625140]
    %v64 = vld.sshfl [vmem:[#allocation1 + $0x10] sm:$0xff pattern:$0x73625140]
    %v65 = vld.sshfl [vmem:[#allocation1 + $0x18] sm:$0xff pattern:$0x73625140]
    %v66 = vld.sshfl [vmem:[#allocation1 + $0x20] sm:$0xff pattern:$0x73625140]
    %v67 = vld.sshfl [vmem:[#allocation1 + $0x28] sm:$0xff pattern:$0x73625140]
    %v68 = vld.sshfl [vmem:[#allocation1 + $0x30] sm:$0xff pattern:$0x73625140]
    %v69 = vld.sshfl [vmem:[#allocation1 + $0x38] sm:$0xff pattern:$0x73625140]
    %78 = vmatpush.xpose.msra.mxu0 0.0
    %79 = vmatpush.xpose.msra.mxu0 0.0
    %80 = vmatpush.xpose.msra.mxu0 0.0
    %81 = vmatpush.xpose.msra.mxu0 0.0
    %82 = vmatpush.xpose.msra.mxu0 0.0
    %83 = vmatpush.xpose.msra.mxu0 0.0
    %84 = vmatpush.xpose.msra.mxu0 0.0
    %85 = vmatpush.xpose.msra.mxu0 0.0
    %86 = vmatpush.xpose.msra.mxu0 0.0
    %87 = vmatpush.xpose.msra.mxu0 0.0
    %88 = vmatpush.xpose.msra.mxu0 0.0
    %89 = vmatpush.xpose.msra.mxu0 0.0
    %90 = vmatpush.xpose.msra.mxu0 0.0
    %91 = vmatpush.xpose.msra.mxu0 0.0
    %92 = vmatpush.xpose.msra.mxu0 0.0
    %93 = vmatpush.xpose.msra.mxu0 %v62
    %94 = vmatmul.f32.gmra.mxu0 %v43
    %v95 = vpop.f32.mrf.mxu0
    %v96 = vadd.f32 0.0, %v95
    %97 = vdwg.mxu0
    %98 = vmatpush.xpose.msra.mxu0 0.0
    %99 = vmatpush.xpose.msra.mxu0 0.0
    %100 = vmatpush.xpose.msra.mxu0 0.0
    %101 = vmatpush.xpose.msra.mxu0 0.0
    %102 = vmatpush.xpose.msra.mxu0 0.0
    %103 = vmatpush.xpose.msra.mxu0 0.0
    %104 = vmatpush.xpose.msra.mxu0 0.0
    %105 = vmatpush.xpose.msra.mxu0 0.0
    %106 = vmatpush.xpose.msra.mxu0 0.0
    %107 = vmatpush.xpose.msra.mxu0 0.0
    %108 = vmatpush.xpose.msra.mxu0 0.0
    %109 = vmatpush.xpose.msra.mxu0 0.0
    %110 = vmatpush.xpose.msra.mxu0 0.0
    %111 = vmatpush.xpose.msra.mxu0 0.0
    %112 = vmatpush.xpose.msra.mxu0 0.0
    %113 = vmatpush.xpose.msra.mxu0 %v63
    %114 = vmatmul.f32.gmra.mxu0 %v44
    %v115 = vpop.f32.mrf.mxu0
    %v116 = vadd.f32 %v96, %v115
    %117 = vdwg.mxu0
    %118 = vmatpush.xpose.msra.mxu0 0.0
    %119 = vmatpush.xpose.msra.mxu0 0.0
    %120 = vmatpush.xpose.msra.mxu0 0.0
    %121 = vmatpush.xpose.msra.mxu0 0.0
    %122 = vmatpush.xpose.msra.mxu0 0.0
    %123 = vmatpush.xpose.msra.mxu0 0.0
    %124 = vmatpush.xpose.msra.mxu0 0.0
    %125 = vmatpush.xpose.msra.mxu0 0.0
    %126 = vmatpush.xpose.msra.mxu0 0.0
    %127 = vmatpush.xpose.msra.mxu0 0.0
    %128 = vmatpush.xpose.msra.mxu0 0.0
    %129 = vmatpush.xpose.msra.mxu0 0.0
    %130 = vmatpush.xpose.msra.mxu0 0.0
    %131 = vmatpush.xpose.msra.mxu0 0.0
    %132 = vmatpush.xpose.msra.mxu0 0.0
    %133 = vmatpush.xpose.msra.mxu0 %v64
    %134 = vmatmul.f32.gmra.mxu0 %v45
    %v135 = vpop.f32.mrf.mxu0
    %v136 = vadd.f32 %v116, %v135
    %137 = vdwg.mxu0
    %138 = vmatpush.xpose.msra.mxu0 0.0
    %139 = vmatpush.xpose.msra.mxu0 0.0
    %140 = vmatpush.xpose.msra.mxu0 0.0
    %141 = vmatpush.xpose.msra.mxu0 0.0
    %142 = vmatpush.xpose.msra.mxu0 0.0
    %143 = vmatpush.xpose.msra.mxu0 0.0
    %144 = vmatpush.xpose.msra.mxu0 0.0
    %145 = vmatpush.xpose.msra.mxu0 0.0
    %146 = vmatpush.xpose.msra.mxu0 0.0
    %147 = vmatpush.xpose.msra.mxu0 0.0
    %148 = vmatpush.xpose.msra.mxu0 0.0
    %149 = vmatpush.xpose.msra.mxu0 0.0
    %150 = vmatpush.xpose.msra.mxu0 0.0
    %151 = vmatpush.xpose.msra.mxu0 0.0
    %152 = vmatpush.xpose.msra.mxu0 0.0
    %153 = vmatpush.xpose.msra.mxu0 %v65
    %154 = vmatmul.f32.gmra.mxu0 %v46
    %v155 = vpop.f32.mrf.mxu0
    %v156 = vadd.f32 %v136, %v155
    %157 = vdwg.mxu0
    %158 = vmatpush.xpose.msra.mxu0 0.0
    %159 = vmatpush.xpose.msra.mxu0 0.0
    %160 = vmatpush.xpose.msra.mxu0 0.0
    %161 = vmatpush.xpose.msra.mxu0 0.0
    %162 = vmatpush.xpose.msra.mxu0 0.0
    %163 = vmatpush.xpose.msra.mxu0 0.0
    %164 = vmatpush.xpose.msra.mxu0 0.0
    %165 = vmatpush.xpose.msra.mxu0 0.0
    %166 = vmatpush.xpose.msra.mxu0 0.0
    %167 = vmatpush.xpose.msra.mxu0 0.0
    %168 = vmatpush.xpose.msra.mxu0 0.0
    %169 = vmatpush.xpose.msra.mxu0 0.0
    %170 = vmatpush.xpose.msra.mxu0 0.0
    %171 = vmatpush.xpose.msra.mxu0 0.0
    %172 = vmatpush.xpose.msra.mxu0 0.0
    %173 = vmatpush.xpose.msra.mxu0 %v66
    %174 = vmatmul.f32.gmra.mxu0 %v47
    %v175 = vpop.f32.mrf.mxu0
    %v176 = vadd.f32 %v156, %v175
    %177 = vdwg.mxu0
    %178 = vmatpush.xpose.msra.mxu0 0.0
    %179 = vmatpush.xpose.msra.mxu0 0.0
    %180 = vmatpush.xpose.msra.mxu0 0.0
    %181 = vmatpush.xpose.msra.mxu0 0.0
    %182 = vmatpush.xpose.msra.mxu0 0.0
    %183 = vmatpush.xpose.msra.mxu0 0.0
    %184 = vmatpush.xpose.msra.mxu0 0.0
    %185 = vmatpush.xpose.msra.mxu0 0.0
    %186 = vmatpush.xpose.msra.mxu0 0.0
    %187 = vmatpush.xpose.msra.mxu0 0.0
    %188 = vmatpush.xpose.msra.mxu0 0.0
    %189 = vmatpush.xpose.msra.mxu0 0.0
    %190 = vmatpush.xpose.msra.mxu0 0.0
    %191 = vmatpush.xpose.msra.mxu0 0.0
    %192 = vmatpush.xpose.msra.mxu0 0.0
    %193 = vmatpush.xpose.msra.mxu0 %v67
    %194 = vmatmul.f32.gmra.mxu0 %v48
    %v195 = vpop.f32.mrf.mxu0
    %v196 = vadd.f32 %v176, %v195
    %197 = vdwg.mxu0
    %198 = vmatpush.xpose.msra.mxu0 0.0
    %199 = vmatpush.xpose.msra.mxu0 0.0
    %200 = vmatpush.xpose.msra.mxu0 0.0
    %201 = vmatpush.xpose.msra.mxu0 0.0
    %202 = vmatpush.xpose.msra.mxu0 0.0
    %203 = vmatpush.xpose.msra.mxu0 0.0
    %204 = vmatpush.xpose.msra.mxu0 0.0
    %205 = vmatpush.xpose.msra.mxu0 0.0
    %206 = vmatpush.xpose.msra.mxu0 0.0
    %207 = vmatpush.xpose.msra.mxu0 0.0
    %208 = vmatpush.xpose.msra.mxu0 0.0
    %209 = vmatpush.xpose.msra.mxu0 0.0
    %210 = vmatpush.xpose.msra.mxu0 0.0
    %211 = vmatpush.xpose.msra.mxu0 0.0
    %212 = vmatpush.xpose.msra.mxu0 0.0
    %213 = vmatpush.xpose.msra.mxu0 %v68
    %214 = vmatmul.f32.gmra.mxu0 %v49
    %v215 = vpop.f32.mrf.mxu0
    %v216 = vadd.f32 %v196, %v215
    %217 = vdwg.mxu0
    %218 = vmatpush.xpose.msra.mxu0 0.0
    %219 = vmatpush.xpose.msra.mxu0 0.0
    %220 = vmatpush.xpose.msra.mxu0 0.0
    %221 = vmatpush.xpose.msra.mxu0 0.0
    %222 = vmatpush.xpose.msra.mxu0 0.0
    %223 = vmatpush.xpose.msra.mxu0 0.0
    %224 = vmatpush.xpose.msra.mxu0 0.0
    %225 = vmatpush.xpose.msra.mxu0 0.0
    %226 = vmatpush.xpose.msra.mxu0 0.0
    %227 = vmatpush.xpose.msra.mxu0 0.0
    %228 = vmatpush.xpose.msra.mxu0 0.0
    %229 = vmatpush.xpose.msra.mxu0 0.0
    %230 = vmatpush.xpose.msra.mxu0 0.0
    %231 = vmatpush.xpose.msra.mxu0 0.0
    %232 = vmatpush.xpose.msra.mxu0 0.0
    %233 = vmatpush.xpose.msra.mxu0 %v69
    %234 = vmatmul.f32.gmra.mxu0 %v50
    %v235 = vpop.f32.mrf.mxu0
    %v236 = vadd.f32 %v216, %v235
    %237 = vdwg.mxu0
    %v238 = vadd.f32 %v37, %v236
    %vm239 = vcmask 9216
    %240 = vst.msk [vmem:[#allocation5] sm:$0x3] %vm239, %v238
    // Predicated region
    $region14: #{tpu_custom_call.1} parent=1 // pred_check
      _
    $region15: #{tpu_custom_call.1} parent=1 // pred_check_branch
      %242 = sbr.rel (0) target = $region17
    $region16: #{tpu_custom_call.1} parent=1 // pred_region
      %244 = vsyncadd [#allocation4], 0
      %s246 = sshll.u32 [#allocation5], 4
      %s247 = int_to_ptr.vmem [resolvable:$true] %s246
      %s248 = sshll.u32 %s1, 4
      %s249 = int_to_ptr.hbm [resolvable:$true] %s248
      %251 = dma.vmem_to_hbm [thread:$0]  %s247, 32, %s249, [#allocation4]
    $region17: #{tpu_custom_call.1} parent=1 // pred_fallthru
      _
    // Predicated region
    $region18: #{tpu_custom_call.1} parent=1 // pred_check
      _
    $region19: #{tpu_custom_call.1} parent=1 // pred_check_branch
      %253 = sbr.rel (0) target = $region21
    $region20: #{tpu_custom_call.1} parent=1 // pred_region
      %255 = dma.done [#allocation4], 32
    $region21: #{tpu_custom_call.1} parent=1 // pred_fallthru
      _
    %256 = vsyncpa [#allocation3], 1
    %257 = vsyncpa [#allocation4], 1

</llo_original>
